<compile_context>
chip_gen: v7x
topology: tpu7x:2x2x1
jax: 0.10.0
libtpu: 0.0.40
codegen_flags: <defaults>
</compile_context>

<pallas_src>
import itertools

import jax
import jax.numpy as jnp
from jax.experimental import pallas as pl
from jax.experimental.pallas import tpu as pltpu


def _round_up(x, m):
    return ((x + m - 1) // m) * m


def _spconv_kernel(x_ref, w_ref, o_ref):
    # One N-tile: (TN, K*Cin_pad) @ (K*Cin_pad, Cout_pad) -> (TN, Cout_pad).
    # bf16 operands, f32 accumulation on the MXU, f32 output (lane-dense).
    o_ref[...] = jnp.dot(
        x_ref[...], w_ref[...], preferred_element_type=jnp.float32
    ).astype(o_ref.dtype)


def minkowski_conv_pallas(gathered, weight, *, tile_n=None):
    """gathered: (N, K*Cin_pad) neighbor features (zeros where neighbor missing,
    contraction dim padded to a multiple of 128), bf16.
    weight:   (K*Cin_pad, Cout_pad) bf16.  Returns (N, Cout_pad) f32."""
    N, KC = gathered.shape
    KCw, cout_p = weight.shape
    assert KC == KCw
    if tile_n is None:
        tile_n = 512 if N >= 512 else 128
    n_pad = _round_up(max(N, tile_n), tile_n)
    if n_pad != N:
        gathered = jnp.pad(gathered, ((0, n_pad - N), (0, 0)))

    out = pl.pallas_call(
        _spconv_kernel,
        out_shape=jax.ShapeDtypeStruct((n_pad, cout_p), jnp.float32),
        grid_spec=pltpu.PrefetchScalarGridSpec(
            num_scalar_prefetch=0,
            grid=(n_pad // tile_n,),
            in_specs=[
                # N-tiled features: lane-dense (K*Cin padded to 128-multiple).
                pl.BlockSpec((tile_n, KC), lambda i: (i, 0)),
                # Whole weight (~55 KB bf16): same block index every step, so
                # it is DMA'd once and stays resident across the grid.
                pl.BlockSpec((KC, cout_p), lambda i: (0, 0)),
            ],
            out_specs=pl.BlockSpec((tile_n, cout_p), lambda i: (i, 0)),
        ),
        compiler_params=pltpu.CompilerParams(
            dimension_semantics=("parallel",),
        ),
    )(gathered, weight)
    return out[:N]


def build_kernel_map(coords, kernel_size=3, dilation=1, dimension=3):
    """Sort/searchsorted-based kernel map: for each point and kernel offset,
    the index of the neighbor whose coordinate equals coord + offset*dilation
    (same batch), plus an existence mask.  O(K*N*log N), no (K, N, N) temp."""
    N = coords.shape[0]
    r = kernel_size // 2
    offsets = jnp.asarray(
        [(0,) + tuple(o * dilation for o in off)
         for off in itertools.product(range(-r, r + 1), repeat=dimension)],
        dtype=coords.dtype,
    )                                                           # (K, 4)

    pad = r * dilation
    cmin = coords.min(axis=0)
    shifted = coords - cmin + pad                               # all >= pad
    extent = shifted.max(axis=0) + pad + 1                      # room for +offsets

    def encode(c):                                              # (..., 4) -> (...)
        key = c[..., 0]
        for d in range(1, coords.shape[-1]):
            key = key * extent[d] + c[..., d]
        return key

    keys = encode(shifted)                                      # (N,)
    order = jnp.argsort(keys)
    sorted_keys = keys[order]

    targets = shifted[None, :, :] + offsets[:, None, :]         # (K, N, 4)
    tkeys = encode(targets)                                     # (K, N)
    pos = jnp.clip(jnp.searchsorted(sorted_keys, tkeys), 0, N - 1)
    exists = sorted_keys[pos] == tkeys                          # (K, N)
    idx = order[pos]                                            # (K, N)
    return idx, exists


class ConvPallas:
    """JAX/Pallas equivalent of the PyTorch `Conv` module."""

    def __init__(self, inplanes, planes, kernel_size=3, stride=1, dilation=1,
                 bias=False, dimension=3, key=None):
        # TODO(synk): stride>1 coordinate-map downsampling (new output coords)
        # is not implemented; the reference module uses the default stride=1.
        assert stride == 1
        assert not bias
        self.inplanes = inplanes
        self.planes = planes
        self.kernel_size = kernel_size
        self.dilation = dilation
        self.dimension = dimension

        K = kernel_size ** dimension
        fan = inplanes * K
        std = (1.0 / fan) ** 0.5
        # ME kernel layout (K, Cin, Cout), f32 master weights.
        self.weight = std * jax.random.normal(
            key, (K, inplanes, planes), jnp.float32
        )

        # Pre-packed MXU operand: reshape to (K*Cin, Cout), pad both dims to
        # multiples of 128 (lane-dense contraction + output), cast to bf16.
        kc = K * inplanes
        self.kc_pad = _round_up(kc, 128)
        self.cout_pad = _round_up(planes, 128)
        w2 = self.weight.reshape(kc, planes)
        w2 = jnp.pad(w2, ((0, self.kc_pad - kc), (0, self.cout_pad - planes)))
        self.weight_packed = w2.astype(jnp.bfloat16)

    def __call__(self, feats, coords):
        K = self.kernel_size ** self.dimension
        idx, exists = build_kernel_map(
            coords, self.kernel_size, self.dilation, self.dimension
        )
        # (N, K, Cin) neighbor features, zero where the neighbor is missing.
        gathered = feats[idx.T] * exists.T[..., None].astype(feats.dtype)
        N = feats.shape[0]
        gathered = gathered.reshape(N, K * self.inplanes)
        gathered = jnp.pad(
            gathered, ((0, 0), (0, self.kc_pad - K * self.inplanes))
        ).astype(jnp.bfloat16)
        # TODO(synk): at very large N, gather rows inside the kernel (scalar-
        # prefetched idx/exists tables) instead of materializing (N, K*Cin).
        out = minkowski_conv_pallas(gathered, self.weight_packed)
        return out[:, : self.planes]


if __name__ == "__main__":
    key = jax.random.PRNGKey(0)
    kf, kw = jax.random.split(key)

    inplanes, planes = 8, 16
    B, G = 2, 4  # 2 batches, each a fully-occupied 4x4x4 grid -> N = 128 points

    grid = jnp.arange(G)
    xs, ys, zs = jnp.meshgrid(grid, grid, grid, indexing="ij")
    one_batch = jnp.stack([xs.ravel(), ys.ravel(), zs.ravel()], axis=-1)
    coords = jnp.concatenate(
        [
            jnp.concatenate(
                [jnp.full((one_batch.shape[0], 1), b, one_batch.dtype), one_batch],
                axis=-1,
            )
            for b in range(B)
        ],
        axis=0,
    ).astype(jnp.int32)                                                # (128, 4)
    N = coords.shape[0]
    feats = jax.random.normal(kf, (N, inplanes), jnp.float32)          # (128, 8)

    conv = ConvPallas(inplanes, planes, kernel_size=3, stride=1,
                      dilation=1, bias=False, dimension=3, key=kw)
    out = conv(feats, coords)
    out = jax.block_until_ready(out)

    # Pure-JAX f32 reference for correctness (bf16 matmul inputs -> loose tol).
    idx, exists = build_kernel_map(coords)
    gathered_ref = feats[idx] * exists[..., None].astype(feats.dtype)  # (K,N,Cin)
    ref = jnp.einsum("knc,kcd->nd", gathered_ref, conv.weight)

    assert out.shape == (N, planes)
    assert jnp.allclose(out, ref, atol=3e-2, rtol=3e-2)
    print("KERNEL_OK")
</pallas_src>

<mosaic_0001>
module attributes {stable_mosaic.version = 11 : i64} {
  func.func @_spconv_kernel(%arg0: i32, %arg1: memref<128x256xbf16, #tpu.memory_space<vmem>>, %arg2: memref<256x128xbf16, #tpu.memory_space<vmem>>, %arg3: memref<128x128xf32, #tpu.memory_space<vmem>>) attributes {dimension_semantics = [#tpu.dimension_semantics<parallel>], iteration_bounds = array<i64: 1>, scalar_prefetch = 0 : i64, scratch_operands = 0 : i64, tpu.core_type = #tpu.core_type<tc>, window_params = [{transform_indices = @transform_0, window_bounds = array<i64: 128, 256>}, {pipeline_mode = #tpu.pipeline_mode<synchronous>, transform_indices = @transform_1, window_bounds = array<i64: 256, 128>}, {transform_indices = @transform_2, window_bounds = array<i64: 128, 128>}]} {
    %c0 = arith.constant 0 : index
    %c0_0 = arith.constant 0 : index
    %0 = vector.load %arg1[%c0, %c0_0] : memref<128x256xbf16, #tpu.memory_space<vmem>>, vector<128x256xbf16>
    %c0_1 = arith.constant 0 : index
    %c0_2 = arith.constant 0 : index
    %1 = vector.load %arg2[%c0_1, %c0_2] : memref<256x128xbf16, #tpu.memory_space<vmem>>, vector<256x128xbf16>
    %cst = arith.constant dense<0.000000e+00> : vector<128x128xf32>
    %2 = tpu.matmul %0, %1, %cst {dimension_numbers = #tpu.dot_dimension_numbers<[1], [0], [0], [1], [0, 0, 1, 1], [], []>} : vector<128x256xbf16>, vector<256x128xbf16>, vector<128x128xf32> -> vector<128x128xf32>
    %c0_3 = arith.constant 0 : index
    %c0_4 = arith.constant 0 : index
    %3 = vector.load %arg3[%c0_3, %c0_4] : memref<128x128xf32, #tpu.memory_space<vmem>>, vector<128x128xf32>
    tpu.vector_store %arg3[%c0_3, %c0_4], %2 {strides = array<i32>} : memref<128x128xf32, #tpu.memory_space<vmem>>, vector<128x128xf32>,
    return
  }
  func.func @transform_0(%arg0: i32) -> (i32, i32) {
    %c0_i32 = arith.constant 0 : i32
    %c0_i32_0 = arith.constant 0 : i32
    return %arg0, %c0_i32 : i32, i32
  }
  func.func @transform_1(%arg0: i32) -> (i32, i32) {
    %c0_i32 = arith.constant 0 : i32
    %c0_i32_0 = arith.constant 0 : i32
    %c0_i32_1 = arith.constant 0 : i32
    return %c0_i32, %c0_i32_0 : i32, i32
  }
  func.func @transform_2(%arg0: i32) -> (i32, i32) {
    %c0_i32 = arith.constant 0 : i32
    %c0_i32_0 = arith.constant 0 : i32
    return %arg0, %c0_i32 : i32, i32
  }
}

</mosaic_0001>

<llo_original>
// kernel: tpu_custom_call.1
$region0: #{tpu_custom_call.1}
  #allocation0 [shape = 'u32[]', space=smem, size = 0x4, offset = 0x4, fixed_abs, tag = 'smem constant byte address 0x4 - core index']
  #allocation1 [shape = 'u32[144,128]{1,0:T(1,128)}', space=vmem, size = 0x12000, scoped, tag = 'internal scratch']
  %s0 = inlined_call_operand.hbm [shape: bf16[128,256], index: 0, kind: input, shape index: {}]
  %s1 = inlined_call_operand.hbm [shape: bf16[256,128], index: 1, kind: input, shape index: {}]
  %s2 = inlined_call_operand.hbm [shape: f32[128,128], index: 2, kind: output, shape index: {}]
  %s3 = sld [smem:[#allocation0]]
  $region26: #{tpu_custom_call.1} parent=0
    _
  %s5 = ssub.s32 1, %s3
  %s6 = scalar_select 0, %s5, %s3
  $region1: #{tpu_custom_call.1} parent=0
    #allocation2 [shape = 'u8[65536]{0}', space=vmem, size = 0x10000, scoped, tag = 'input window, operand 0, single buffered']
    #allocation3 [shape = 's32[1]{0}', space=sflag, size = 0x4, scoped, tag = 'scoped memory for tpu_custom_call.1']
    #allocation4 [shape = 's32[1]{0}', space=sflag, size = 0x4, scoped, tag = 'scoped memory for tpu_custom_call.1']
    #allocation5 [shape = 'u8[65536]{0}', space=vmem, size = 0x10000, scoped, tag = 'input window, operand 1, single buffered']
    #allocation6 [shape = 's32[1]{0}', space=sflag, size = 0x4, scoped, tag = 'scoped memory for tpu_custom_call.1']
    #allocation7 [shape = 'u8[65536]{0}', space=vmem, size = 0x10000, scoped, tag = 'output window, operand 0, single buffered']
    %7 = vsyncpa [#allocation3], 0
    %8 = vsyncpa [#allocation6], 0
    %9 = vsyncpa [#allocation4], 0
    // Predicated region
    $region2: #{tpu_custom_call.1} parent=1 // pred_check
      _
    $region3: #{tpu_custom_call.1} parent=1 // pred_check_branch
      %11 = sbr.rel (0) target = $region5
    $region4: #{tpu_custom_call.1} parent=1 // pred_region
      %s13 = ssub.s32 2048, 2048
      %14 = vsyncadd [#allocation3], %s13
      %s15 = sshll.u32 [#allocation2], 4
      %s16 = int_to_ptr.vmem [resolvable:$true] %s15
      %21 = dma.hbm_to_vmem [thread:$0]  %s0, 2048, %s16, [#allocation3], 128, 128, 8
    $region5: #{tpu_custom_call.1} parent=1 // pred_fallthru
      _
    // Predicated region
    $region6: #{tpu_custom_call.1} parent=1 // pred_check
      _
    $region7: #{tpu_custom_call.1} parent=1 // pred_check_branch
      %23 = sbr.rel (0) target = $region9
    $region8: #{tpu_custom_call.1} parent=1 // pred_region
      %s25 = ssub.s32 2048, 2048
      %26 = vsyncadd [#allocation6], %s25
      %s27 = sshll.u32 [#allocation5], 4
      %s28 = int_to_ptr.vmem [resolvable:$true] %s27
      %33 = dma.hbm_to_vmem [thread:$0]  %s1, 2048, %s28, [#allocation6], 64, 64, 4
    $region9: #{tpu_custom_call.1} parent=1 // pred_fallthru
      _
    // Predicated region
    $region10: #{tpu_custom_call.1} parent=1 // pred_check
      _
    $region11: #{tpu_custom_call.1} parent=1 // pred_check_branch
      %35 = sbr.rel (0) target = $region13
    $region12: #{tpu_custom_call.1} parent=1 // pred_region
      %36 = dma.done [#allocation3], 2048
    $region13: #{tpu_custom_call.1} parent=1 // pred_fallthru
      _
    // Predicated region
    $region14: #{tpu_custom_call.1} parent=1 // pred_check
      _
    $region15: #{tpu_custom_call.1} parent=1 // pred_check_branch
      %38 = sbr.rel (0) target = $region17
    $region16: #{tpu_custom_call.1} parent=1 // pred_region
      %39 = dma.done [#allocation6], 2048
    $region17: #{tpu_custom_call.1} parent=1 // pred_fallthru
      _
    %v41 = vld [vmem:[#allocation2] sm:$0xff]
    %v42 = vld [vmem:[#allocation2 + $0x8] sm:$0xff]
    %v43 = vld [vmem:[#allocation2 + $0x10] sm:$0xff]
    %v44 = vld [vmem:[#allocation2 + $0x18] sm:$0xff]
    %v45 = vld [vmem:[#allocation2 + $0x20] sm:$0xff]
    %v46 = vld [vmem:[#allocation2 + $0x28] sm:$0xff]
    %v47 = vld [vmem:[#allocation2 + $0x30] sm:$0xff]
    %v48 = vld [vmem:[#allocation2 + $0x38] sm:$0xff]
    %v49 = vld [vmem:[#allocation2 + $0x40] sm:$0xff]
    %v50 = vld [vmem:[#allocation2 + $0x48] sm:$0xff]
    %v51 = vld [vmem:[#allocation2 + $0x50] sm:$0xff]
    %v52 = vld [vmem:[#allocation2 + $0x58] sm:$0xff]
    %v53 = vld [vmem:[#allocation2 + $0x60] sm:$0xff]
    %v54 = vld [vmem:[#allocation2 + $0x68] sm:$0xff]
    %v55 = vld [vmem:[#allocation2 + $0x70] sm:$0xff]
    %v56 = vld [vmem:[#allocation2 + $0x78] sm:$0xff]
    %v57 = vld [vmem:[#allocation5] sm:$0xf]
    %v58 = vld [vmem:[#allocation5 + $0x4] sm:$0xf]
    %v59 = vld [vmem:[#allocation5 + $0x8] sm:$0xf]
    %v60 = vld [vmem:[#allocation5 + $0xc] sm:$0xf]
    %v61 = vld [vmem:[#allocation5 + $0x10] sm:$0xf]
    %v62 = vld [vmem:[#allocation5 + $0x14] sm:$0xf]
    %v63 = vld [vmem:[#allocation5 + $0x18] sm:$0xf]
    %v64 = vld [vmem:[#allocation5 + $0x1c] sm:$0xf]
    %v65 = vld [vmem:[#allocation5 + $0x20] sm:$0xf]
    %v66 = vld [vmem:[#allocation5 + $0x24] sm:$0xf]
    %v67 = vld [vmem:[#allocation5 + $0x28] sm:$0xf]
    %v68 = vld [vmem:[#allocation5 + $0x2c] sm:$0xf]
    %v69 = vld [vmem:[#allocation5 + $0x30] sm:$0xf]
    %v70 = vld [vmem:[#allocation5 + $0x34] sm:$0xf]
    %v71 = vld [vmem:[#allocation5 + $0x38] sm:$0xf]
    %v72 = vld [vmem:[#allocation5 + $0x3c] sm:$0xf]
    %v73 = vld [vmem:[#allocation5 + $0x40] sm:$0xf]
    %v74 = vld [vmem:[#allocation5 + $0x44] sm:$0xf]
    %v75 = vld [vmem:[#allocation5 + $0x48] sm:$0xf]
    %v76 = vld [vmem:[#allocation5 + $0x4c] sm:$0xf]
    %v77 = vld [vmem:[#allocation5 + $0x50] sm:$0xf]
    %v78 = vld [vmem:[#allocation5 + $0x54] sm:$0xf]
    %v79 = vld [vmem:[#allocation5 + $0x58] sm:$0xf]
    %v80 = vld [vmem:[#allocation5 + $0x5c] sm:$0xf]
    %v81 = vld [vmem:[#allocation5 + $0x60] sm:$0xf]
    %v82 = vld [vmem:[#allocation5 + $0x64] sm:$0xf]
    %v83 = vld [vmem:[#allocation5 + $0x68] sm:$0xf]
    %v84 = vld [vmem:[#allocation5 + $0x6c] sm:$0xf]
    %v85 = vld [vmem:[#allocation5 + $0x70] sm:$0xf]
    %v86 = vld [vmem:[#allocation5 + $0x74] sm:$0xf]
    %v87 = vld [vmem:[#allocation5 + $0x78] sm:$0xf]
    %v88 = vld [vmem:[#allocation5 + $0x7c] sm:$0xf]
    %v105 = vunpack.c.l.b16 %v41
    %v106 = vunpack.c.h.b16 %v41
    %v107 = vunpack.c.l.b16 %v42
    %v108 = vunpack.c.h.b16 %v42
    %v109 = vunpack.c.l.b16 %v43
    %v110 = vunpack.c.h.b16 %v43
    %v111 = vunpack.c.l.b16 %v44
    %v112 = vunpack.c.h.b16 %v44
    %v113 = vunpack.c.l.b16 %v45
    %v114 = vunpack.c.h.b16 %v45
    %v115 = vunpack.c.l.b16 %v46
    %v116 = vunpack.c.h.b16 %v46
    %v117 = vunpack.c.l.b16 %v47
    %v118 = vunpack.c.h.b16 %v47
    %v119 = vunpack.c.l.b16 %v48
    %v120 = vunpack.c.h.b16 %v48
    %v121 = vunpack.c.l.b16 %v49
    %v122 = vunpack.c.h.b16 %v49
    %v123 = vunpack.c.l.b16 %v50
    %v124 = vunpack.c.h.b16 %v50
    %v125 = vunpack.c.l.b16 %v51
    %v126 = vunpack.c.h.b16 %v51
    %v127 = vunpack.c.l.b16 %v52
    %v128 = vunpack.c.h.b16 %v52
    %v129 = vunpack.c.l.b16 %v53
    %v130 = vunpack.c.h.b16 %v53
    %v131 = vunpack.c.l.b16 %v54
    %v132 = vunpack.c.h.b16 %v54
    %v133 = vunpack.c.l.b16 %v55
    %v134 = vunpack.c.h.b16 %v55
    %v135 = vunpack.c.l.b16 %v56
    %v136 = vunpack.c.h.b16 %v56
    %v137 = vpack.c.b16 %v107, %v105
    %v138 = vpack.c.b16 %v108, %v106
    %v139 = vpack.c.b16 %v111, %v109
    %v140 = vpack.c.b16 %v112, %v110
    %v141 = vpack.c.b16 %v115, %v113
    %v142 = vpack.c.b16 %v116, %v114
    %v143 = vpack.c.b16 %v119, %v117
    %v144 = vpack.c.b16 %v120, %v118
    %v145 = vpack.c.b16 %v123, %v121
    %v146 = vpack.c.b16 %v124, %v122
    %v147 = vpack.c.b16 %v127, %v125
    %v148 = vpack.c.b16 %v128, %v126
    %v149 = vpack.c.b16 %v131, %v129
    %v150 = vpack.c.b16 %v132, %v130
    %v151 = vpack.c.b16 %v135, %v133
    %v152 = vpack.c.b16 %v136, %v134
    %v201 = vunpack.c.l.b16 %v57
    %v202 = vunpack.c.l.b16 %v58
    %v203 = vunpack.c.l.b16 %v59
    %v204 = vunpack.c.l.b16 %v60
    %v205 = vunpack.c.l.b16 %v61
    %v206 = vunpack.c.l.b16 %v62
    %v207 = vunpack.c.l.b16 %v63
    %v208 = vunpack.c.l.b16 %v64
    %v209 = vunpack.c.l.b16 %v65
    %v210 = vunpack.c.l.b16 %v66
    %v211 = vunpack.c.l.b16 %v67
    %v212 = vunpack.c.l.b16 %v68
    %v213 = vunpack.c.l.b16 %v69
    %v214 = vunpack.c.l.b16 %v70
    %v215 = vunpack.c.l.b16 %v71
    %v216 = vunpack.c.l.b16 %v72
    %v217 = vunpack.c.l.b16 %v73
    %v218 = vunpack.c.l.b16 %v74
    %v219 = vunpack.c.l.b16 %v75
    %v220 = vunpack.c.l.b16 %v76
    %v221 = vunpack.c.l.b16 %v77
    %v222 = vunpack.c.l.b16 %v78
    %v223 = vunpack.c.l.b16 %v79
    %v224 = vunpack.c.l.b16 %v80
    %v225 = vunpack.c.l.b16 %v81
    %v226 = vunpack.c.l.b16 %v82
    %v227 = vunpack.c.l.b16 %v83
    %v228 = vunpack.c.l.b16 %v84
    %v229 = vunpack.c.l.b16 %v85
    %v230 = vunpack.c.l.b16 %v86
    %v231 = vunpack.c.l.b16 %v87
    %v232 = vunpack.c.l.b16 %v88
    %v233 = vpack.c.b16 %v202, %v201
    %v234 = vpack.c.b16 %v204, %v203
    %v235 = vpack.c.b16 %v206, %v205
    %v236 = vpack.c.b16 %v208, %v207
    %v237 = vpack.c.b16 %v210, %v209
    %v238 = vpack.c.b16 %v212, %v211
    %v239 = vpack.c.b16 %v214, %v213
    %v240 = vpack.c.b16 %v216, %v215
    %v241 = vpack.c.b16 %v218, %v217
    %v242 = vpack.c.b16 %v220, %v219
    %v243 = vpack.c.b16 %v222, %v221
    %v244 = vpack.c.b16 %v224, %v223
    %v245 = vpack.c.b16 %v226, %v225
    %v246 = vpack.c.b16 %v228, %v227
    %v247 = vpack.c.b16 %v230, %v229
    %v248 = vpack.c.b16 %v232, %v231
    %265 = vmatprep.subr.bf16.mxu0 0
    %266 = vmatpush1.bf16.msra.mxu0 %v233
    %267 = vmatprep.subr.bf16.mxu0 0
    %268 = vmatpush1.bf16.msra.mxu0 %v234
    %269 = vmatprep.subr.bf16.mxu0 0
    %270 = vmatpush1.bf16.msra.mxu0 %v235
    %271 = vmatprep.subr.bf16.mxu0 0
    %272 = vmatpush1.bf16.msra.mxu0 %v236
    %273 = vmatprep.subr.bf16.mxu0 0
    %274 = vmatpush1.bf16.msra.mxu0 %v237
    %275 = vmatprep.subr.bf16.mxu0 0
    %276 = vmatpush1.bf16.msra.mxu0 %v238
    %277 = vmatprep.subr.bf16.mxu0 0
    %278 = vmatpush1.bf16.msra.mxu0 %v239
    %279 = vmatprep.subr.bf16.mxu0 0
    %280 = vmatpush1.bf16.msra.mxu0 %v240
    %281 = vmatprep.subr.bf16.mxu0 0
    %282 = vmatpush1.bf16.msra.mxu0 %v241
    %283 = vmatprep.subr.bf16.mxu0 0
    %284 = vmatpush1.bf16.msra.mxu0 %v242
    %285 = vmatprep.subr.bf16.mxu0 0
    %286 = vmatpush1.bf16.msra.mxu0 %v243
    %287 = vmatprep.subr.bf16.mxu0 0
    %288 = vmatpush1.bf16.msra.mxu0 %v244
    %289 = vmatprep.subr.bf16.mxu0 0
    %290 = vmatpush1.bf16.msra.mxu0 %v245
    %291 = vmatprep.subr.bf16.mxu0 0
    %292 = vmatpush1.bf16.msra.mxu0 %v246
    %293 = vmatprep.subr.bf16.mxu0 0
    %294 = vmatpush1.bf16.msra.mxu0 %v247
    %295 = vmatprep.subr.bf16.mxu0 0
    %296 = vmatpush1.bf16.msra.mxu0 %v248
    %297 = vmatprep.mubr.bf16.mxu0 %v138
    %298 = vmatmul.mubr.bf16.gmra.mrb[0].mxu0 %v137
    %v299 = vpop.f32.mrb[0].mxu0
    %v300 = vadd.f32 0.0, %v299
    %v301 = vpop.f32.mrb[0].mxu0
    %v302 = vpop.f32.mrb[0].mxu0
    %v303 = vadd.f32 0.0, %v302
    %v304 = vpop.f32.mrb[0].mxu0
    %305 = vmatprep.mubr.bf16.mxu0 %v140
    %306 = vmatmul.mubr.bf16.gmra.mrb[0].mxu0 %v139
    %v307 = vpop.f32.mrb[0].mxu0
    %v308 = vadd.f32 0.0, %v307
    %v309 = vpop.f32.mrb[0].mxu0
    %v310 = vpop.f32.mrb[0].mxu0
    %v311 = vadd.f32 0.0, %v310
    %v312 = vpop.f32.mrb[0].mxu0
    %313 = vmatprep.mubr.bf16.mxu0 %v142
    %314 = vmatmul.mubr.bf16.gmra.mrb[0].mxu0 %v141
    %v315 = vpop.f32.mrb[0].mxu0
    %v316 = vadd.f32 0.0, %v315
    %v317 = vpop.f32.mrb[0].mxu0
    %v318 = vpop.f32.mrb[0].mxu0
    %v319 = vadd.f32 0.0, %v318
    %v320 = vpop.f32.mrb[0].mxu0
    %321 = vmatprep.mubr.bf16.mxu0 %v144
    %322 = vmatmul.mubr.bf16.gmra.mrb[0].mxu0 %v143
    %v323 = vpop.f32.mrb[0].mxu0
    %v324 = vadd.f32 0.0, %v323
    %v325 = vpop.f32.mrb[0].mxu0
    %v326 = vpop.f32.mrb[0].mxu0
    %v327 = vadd.f32 0.0, %v326
    %v328 = vpop.f32.mrb[0].mxu0
    %329 = vmatprep.mubr.bf16.mxu0 %v146
    %330 = vmatmul.mubr.bf16.gmra.mrb[0].mxu0 %v145
    %v331 = vpop.f32.mrb[0].mxu0
    %v332 = vadd.f32 0.0, %v331
    %v333 = vpop.f32.mrb[0].mxu0
    %v334 = vpop.f32.mrb[0].mxu0
    %v335 = vadd.f32 0.0, %v334
    %v336 = vpop.f32.mrb[0].mxu0
    %337 = vmatprep.mubr.bf16.mxu0 %v148
    %338 = vmatmul.mubr.bf16.gmra.mrb[0].mxu0 %v147
    %v339 = vpop.f32.mrb[0].mxu0
    %v340 = vadd.f32 0.0, %v339
    %v341 = vpop.f32.mrb[0].mxu0
    %v342 = vpop.f32.mrb[0].mxu0
    %v343 = vadd.f32 0.0, %v342
    %v344 = vpop.f32.mrb[0].mxu0
    %345 = vmatprep.mubr.bf16.mxu0 %v150
    %346 = vmatmul.mubr.bf16.gmra.mrb[0].mxu0 %v149
    %v347 = vpop.f32.mrb[0].mxu0
    %v348 = vadd.f32 0.0, %v347
    %v349 = vpop.f32.mrb[0].mxu0
    %v350 = vpop.f32.mrb[0].mxu0
    %v351 = vadd.f32 0.0, %v350
    %v352 = vpop.f32.mrb[0].mxu0
    %353 = vmatprep.mubr.bf16.mxu0 %v152
    %354 = vmatmul.mubr.bf16.gmra.mrb[0].mxu0 %v151
    %v355 = vpop.f32.mrb[0].mxu0
    %v356 = vadd.f32 0.0, %v355
    %v357 = vpop.f32.mrb[0].mxu0
    %v358 = vpop.f32.mrb[0].mxu0
    %v359 = vadd.f32 0.0, %v358
    %v360 = vpop.f32.mrb[0].mxu0
    %361 = vdwg.mxu0
    %362 = vst [vmem:[#allocation7] sm:$0xff] %v300
    %363 = vst [vmem:[#allocation7 + $0x8] sm:$0xff] %v303
    %364 = vst [vmem:[#allocation7 + $0x10] sm:$0xff] %v308
    %365 = vst [vmem:[#allocation7 + $0x18] sm:$0xff] %v311
    %366 = vst [vmem:[#allocation7 + $0x20] sm:$0xff] %v316
    %367 = vst [vmem:[#allocation7 + $0x28] sm:$0xff] %v319
    %368 = vst [vmem:[#allocation7 + $0x30] sm:$0xff] %v324
    %369 = vst [vmem:[#allocation7 + $0x38] sm:$0xff] %v327
    %370 = vst [vmem:[#allocation7 + $0x40] sm:$0xff] %v332
    %371 = vst [vmem:[#allocation7 + $0x48] sm:$0xff] %v335
    %372 = vst [vmem:[#allocation7 + $0x50] sm:$0xff] %v340
    %373 = vst [vmem:[#allocation7 + $0x58] sm:$0xff] %v343
    %374 = vst [vmem:[#allocation7 + $0x60] sm:$0xff] %v348
    %375 = vst [vmem:[#allocation7 + $0x68] sm:$0xff] %v351
    %376 = vst [vmem:[#allocation7 + $0x70] sm:$0xff] %v356
    %377 = vst [vmem:[#allocation7 + $0x78] sm:$0xff] %v359
    // Predicated region
    $region18: #{tpu_custom_call.1} parent=1 // pred_check
      _
    $region19: #{tpu_custom_call.1} parent=1 // pred_check_branch
      %379 = sbr.rel (0) target = $region21
    $region20: #{tpu_custom_call.1} parent=1 // pred_region
      %s381 = ssub.s32 2048, 2048
      %382 = vsyncadd [#allocation4], %s381
      %s383 = sshll.u32 [#allocation7], 4
      %s384 = int_to_ptr.vmem [resolvable:$true] %s383
      %389 = dma.vmem_to_hbm [thread:$0]  %s384, 2048, %s2, [#allocation4], 128, 128, 8
    $region21: #{tpu_custom_call.1} parent=1 // pred_fallthru
      _
    // Predicated region
    $region22: #{tpu_custom_call.1} parent=1 // pred_check
      _
    $region23: #{tpu_custom_call.1} parent=1 // pred_check_branch
      %391 = sbr.rel (0) target = $region25
    $region24: #{tpu_custom_call.1} parent=1 // pred_region
      %392 = dma.done [#allocation4], 2048
    $region25: #{tpu_custom_call.1} parent=1 // pred_fallthru
      _
    %393 = vsyncpa [#allocation3], 1
    %394 = vsyncpa [#allocation6], 1
    %395 = vsyncpa [#allocation4], 1

</llo_original>
